<compile_context>
chip_gen: v6e
topology: v6e:2x2x1
jax: 0.10.0
libtpu: 0.0.40
codegen_flags: <defaults>
</compile_context>

<pallas_src>
import jax
import jax.numpy as jnp
from jax.experimental import pallas as pl
from jax.experimental.pallas import tpu as pltpu


def _cdiv(a, b):
    return -(-a // b)


def _round_up(x, m):
    return ((x + m - 1) // m) * m


def _make_kernel(num_objs, num_frames, pose_dim, block_rows, acc_rows, inv_norm):
    """Builds the masked sum-of-squares kernel for `num_objs` pose inputs."""

    def kernel(*refs):
        x_refs = refs[:num_objs]
        o_ref = refs[num_objs]
        acc_ref = refs[num_objs + 1]

        i = pl.program_id(1)            # reduction ("arbitrary") axis
        steps = pl.num_programs(1)

        @pl.when(i == 0)
        def _init():
            acc_ref[...] = jnp.zeros_like(acc_ref)

        # Unclamped global row-block index (the index_map clamps the DMA so it
        # never targets a fully out-of-range block; anything past the real
        # frame range is masked to zero here).
        blk = pl.program_id(0) * steps + i
        row0 = blk * block_rows
        rows = row0 + jax.lax.broadcasted_iota(jnp.int32, (block_rows, pose_dim), 0)
        cols = jax.lax.broadcasted_iota(jnp.int32, (block_rows, pose_dim), 1)
        keep = (rows < num_frames) & (cols >= 3) & (cols < 48)

        partial = jnp.zeros((acc_rows, pose_dim), jnp.float32)
        for x_ref in x_refs:
            x = x_ref[...].astype(jnp.float32)
            x2 = jnp.where(keep, x * x, 0.0)
            # (block_rows, P) -> (G, acc_rows, P): summing the leading axis is
            # pure vreg-wise VPU adds over acc_rows independent accumulators.
            partial = partial + jnp.sum(x2.reshape(-1, acc_rows, pose_dim), axis=0)
        acc_ref[...] += partial

        # Single cross-lane/sublane reduction + normalization, last step only.
        @pl.when(i == steps - 1)
        def _finalize():
            val = jnp.sum(acc_ref[...]) * inv_norm
            o_ref[...] = jnp.broadcast_to(val, o_ref.shape)

    return kernel


def mano_reg_loss(poses, subset=None, *, row_tile=4096, use_pallas=None,
                  split_cores=None):
    """JAX/Pallas equivalent of MANORegLoss.forward.

    poses: list of (num_frames, pose_dim) arrays, pose_dim >= 48
           (MANO pose vector; dims 3:48 are the 45 articulation params).
    use_pallas:  None = auto (tiny inputs use one fused XLA reduction).
    split_cores: None = auto-gate a 2-way row split (v7x megacore win).
    """
    if subset is None:
        subset = list(range(len(poses)))
    if len(subset) == 0:
        raise ValueError("MANORegLoss: subset must be non-empty")

    xs = [jnp.asarray(poses[i]) for i in subset]
    num_objs = len(xs)
    if xs[0].ndim != 2:
        raise ValueError("each selected pose array must be (num_frames, pose_dim)")
    num_frames, pose_dim = xs[0].shape
    for x in xs:
        if x.shape != (num_frames, pose_dim):
            raise ValueError("all selected pose arrays must share the same shape")
    if pose_dim < 48:
        raise ValueError("pose_dim must be >= 48 to slice [..., 3:48]")
    if num_frames == 0:
        # torch: 0-sum / 0 frames -> nan
        return jnp.array(jnp.nan, dtype=jnp.float32)

    n_effective = num_objs * num_frames * 45
    if use_pallas is None:
        use_pallas = n_effective >= 65536
    if not use_pallas:
        X = jnp.stack([x[:, 3:48] for x in xs], axis=0).astype(jnp.float32)
        return jnp.sum(X * X) / jnp.float32(num_objs * num_frames)

    itemsize = jnp.dtype(xs[0].dtype).itemsize

    # Tile as many frame-rows per grid step as VMEM comfortably allows
    # (double-buffered inputs kept under ~8 MiB), capped by `row_tile`.
    row_tile = max(8, _round_up(int(row_tile), 8))
    vmem_budget = 8 * 1024 * 1024
    rows_by_vmem = max(8, (vmem_budget // (2 * num_objs * pose_dim * itemsize)) // 8 * 8)
    cap = min(row_tile, rows_by_vmem)
    if num_frames <= cap:
        block_rows = num_frames          # full-extent block: always legal
    else:
        block_rows = max(32, (cap // 32) * 32)   # multiple of 32: any dtype packing
    acc_rows = next((a for a in (32, 16, 8) if block_rows % a == 0), block_rows)

    num_blocks = _cdiv(num_frames, block_rows)

    if split_cores is None:
        split_cores = (num_blocks >= 2 and
                       num_objs * num_frames * pose_dim * itemsize > (16 << 20))
    n_split = 2 if (split_cores and num_blocks >= 2) else 1
    steps_per_core = _cdiv(num_blocks, n_split)

    inv_norm = 1.0 / float(num_objs * num_frames)
    kernel = _make_kernel(num_objs, num_frames, pose_dim, block_rows, acc_rows,
                          inv_norm)

    if n_split == 1:
        def in_map(c, i):
            return (i, 0)
    else:
        def in_map(c, i):
            blk = c * steps_per_core + i
            # Clamp so the DMA never goes fully out of range; the kernel masks
            # those rows to zero based on the unclamped index.
            return (jnp.minimum(blk, num_blocks - 1), 0)

    cost = pl.CostEstimate(
        flops=2 * num_objs * num_frames * 45,
        transcendentals=0,
        bytes_accessed=num_objs * num_frames * pose_dim * itemsize
        + n_split * 8 * 128 * 4,
    )

    out = pl.pallas_call(
        kernel,
        out_shape=jax.ShapeDtypeStruct((n_split, 8, 128), jnp.float32),
        grid_spec=pltpu.PrefetchScalarGridSpec(
            num_scalar_prefetch=0,
            grid=(n_split, steps_per_core),
            in_specs=[pl.BlockSpec((block_rows, pose_dim), in_map)
                      for _ in range(num_objs)],
            out_specs=pl.BlockSpec((1, 8, 128), lambda c, i: (c, 0, 0)),
            scratch_shapes=[pltpu.VMEM((acc_rows, pose_dim), jnp.float32)],
        ),
        compiler_params=pltpu.CompilerParams(
            dimension_semantics=("parallel", "arbitrary"),
        ),
        cost_estimate=cost,
    )(*xs)

    if n_split == 1:
        return out[0, 0, 0]
    return jnp.sum(out[:, 0, 0])


if __name__ == "__main__":
    key = jax.random.PRNGKey(0)
    num_objs = 2      # pose sequences in the list
    num_frames = 8    # frames per sequence
    pose_dim = 51     # MANO pose vector: [global_rot(3), hand_pose(45), extra(3)]

    keys = jax.random.split(key, num_objs)
    poses = [jax.random.normal(k, (num_frames, pose_dim), dtype=jnp.float32)
             for k in keys]

    # 1) Canonical tiny MANO size -- force the Pallas path so the kernel runs.
    loss = jax.block_until_ready(mano_reg_loss(poses, use_pallas=True))
    X_ref = jnp.stack([p[:, 3:48] for p in poses], axis=0)
    ref = jnp.sum(X_ref * X_ref) / (num_objs * num_frames)
    assert jnp.allclose(loss, ref, rtol=1e-5, atol=1e-5), (loss, ref)

    # 2) Multi-tile case with a ragged last block (400 rows, 64-row tiles).
    keys2 = jax.random.split(jax.random.PRNGKey(1), 3)
    poses2 = [jax.random.normal(k, (400, pose_dim), dtype=jnp.float32)
              for k in keys2]
    X2 = jnp.stack([p[:, 3:48] for p in poses2], axis=0)
    ref2 = jnp.sum(X2 * X2) / (3 * 400)
    loss2 = jax.block_until_ready(
        mano_reg_loss(poses2, row_tile=64, use_pallas=True))
    assert jnp.allclose(loss2, ref2, rtol=1e-5, atol=1e-5), (loss2, ref2)

    # 3) Force the gated 2-way core-split path (correct on any chip: the
    #    "parallel" axis simply runs sequentially on 1-TC generations).
    loss3 = jax.block_until_ready(
        mano_reg_loss(poses2, row_tile=64, use_pallas=True, split_cores=True))
    assert jnp.allclose(loss3, ref2, rtol=1e-5, atol=1e-5), (loss3, ref2)

    # 4) Subset selection through the kernel path.
    X4 = jnp.stack([poses2[i][:, 3:48] for i in (0, 2)], axis=0)
    ref4 = jnp.sum(X4 * X4) / (2 * 400)
    loss4 = jax.block_until_ready(
        mano_reg_loss(poses2, subset=[0, 2], row_tile=128, use_pallas=True))
    assert jnp.allclose(loss4, ref4, rtol=1e-5, atol=1e-5), (loss4, ref4)

    # 5) Auto path at tiny size falls back to a single fused XLA reduction.
    loss5 = jax.block_until_ready(mano_reg_loss(poses))
    assert jnp.allclose(loss5, ref, rtol=1e-5, atol=1e-5), (loss5, ref)

    print("KERNEL_OK")
</pallas_src>

<mosaic_0001>
module attributes {stable_mosaic.version = 11 : i64} {
  func.func @kernel(%arg0: i32, %arg1: i32, %arg2: memref<8x51xf32, #tpu.memory_space<vmem>>, %arg3: memref<8x51xf32, #tpu.memory_space<vmem>>, %arg4: memref<1x8x128xf32, #tpu.memory_space<vmem>>, %arg5: memref<8x51xf32, #tpu.memory_space<vmem>>) attributes {dimension_semantics = [#tpu.dimension_semantics<parallel>, #tpu.dimension_semantics<arbitrary>], iteration_bounds = array<i64: 1, 1>, scalar_prefetch = 0 : i64, scratch_operands = 1 : i64, tpu.core_type = #tpu.core_type<tc>, window_params = [{transform_indices = @transform_0, window_bounds = array<i64: 8, 51>}, {transform_indices = @transform_1, window_bounds = array<i64: 8, 51>}, {transform_indices = @transform_2, window_bounds = array<i64: 1, 8, 128>}]} {
    %c0_i32 = arith.constant 0 : i32
    %0 = arith.cmpi eq, %arg1, %c0_i32 : i32
    %1 = arith.extui %0 : i1 to i32
    %c0_i32_0 = arith.constant 0 : i32
    %2 = arith.cmpi ne, %1, %c0_i32_0 : i32
    scf.if %2 {
      %cst_15 = arith.constant 0.000000e+00 : f32
      %39 = vector.broadcast %cst_15 : f32 to vector<8x51xf32>
      %c0_16 = arith.constant 0 : index
      %c0_17 = arith.constant 0 : index
      %40 = vector.load %arg5[%c0_16, %c0_17] : memref<8x51xf32, #tpu.memory_space<vmem>>, vector<8x51xf32>
      tpu.vector_store %arg5[%c0_16, %c0_17], %39 {strides = array<i32>} : memref<8x51xf32, #tpu.memory_space<vmem>>, vector<8x51xf32>,
    } else {
    }
    %c1_i32 = arith.constant 1 : i32
    %3 = arith.muli %arg0, %c1_i32 : i32
    %4 = arith.addi %3, %arg1 : i32
    %c8_i32 = arith.constant 8 : i32
    %5 = arith.muli %4, %c8_i32 : i32
    %6 = tpu.iota {dimensions = array<i32: 0>} : vector<8x51xi32>
    %7 = vector.broadcast %5 : i32 to vector<8x51xi32>
    %8 = arith.addi %7, %6 : vector<8x51xi32>
    %9 = tpu.iota {dimensions = array<i32: 1>} : vector<8x51xi32>
    %c8_i32_1 = arith.constant 8 : i32
    %10 = vector.broadcast %c8_i32_1 : i32 to vector<8x51xi32>
    %11 = arith.cmpi slt, %8, %10 : vector<8x51xi32>
    %c3_i32 = arith.constant 3 : i32
    %12 = vector.broadcast %c3_i32 : i32 to vector<8x51xi32>
    %13 = arith.cmpi sge, %9, %12 : vector<8x51xi32>
    %14 = arith.andi %11, %13 : vector<8x51xi1>
    %c48_i32 = arith.constant 48 : i32
    %15 = vector.broadcast %c48_i32 : i32 to vector<8x51xi32>
    %16 = arith.cmpi slt, %9, %15 : vector<8x51xi32>
    %17 = arith.andi %14, %16 : vector<8x51xi1>
    %cst = arith.constant 0.000000e+00 : f32
    %18 = vector.broadcast %cst : f32 to vector<8x51xf32>
    %c0 = arith.constant 0 : index
    %c0_2 = arith.constant 0 : index
    %19 = vector.load %arg2[%c0, %c0_2] : memref<8x51xf32, #tpu.memory_space<vmem>>, vector<8x51xf32>
    %20 = arith.mulf %19, %19 : vector<8x51xf32>
    %cst_3 = arith.constant 0.000000e+00 : f32
    %21 = vector.broadcast %cst_3 : f32 to vector<8x51xf32>
    %22 = arith.select %17, %20, %21 : vector<8x51xi1>, vector<8x51xf32>
    %23 = vector.shape_cast %22 : vector<8x51xf32> to vector<1x8x51xf32>
    %cst_4 = arith.constant dense<0.000000e+00> : vector<8x51xf32>
    %24 = vector.multi_reduction <add>, %23, %cst_4 [0] : vector<1x8x51xf32> to vector<8x51xf32>
    %25 = arith.addf %18, %24 : vector<8x51xf32>
    %c0_5 = arith.constant 0 : index
    %c0_6 = arith.constant 0 : index
    %26 = vector.load %arg3[%c0_5, %c0_6] : memref<8x51xf32, #tpu.memory_space<vmem>>, vector<8x51xf32>
    %27 = arith.mulf %26, %26 : vector<8x51xf32>
    %cst_7 = arith.constant 0.000000e+00 : f32
    %28 = vector.broadcast %cst_7 : f32 to vector<8x51xf32>
    %29 = arith.select %17, %27, %28 : vector<8x51xi1>, vector<8x51xf32>
    %30 = vector.shape_cast %29 : vector<8x51xf32> to vector<1x8x51xf32>
    %cst_8 = arith.constant dense<0.000000e+00> : vector<8x51xf32>
    %31 = vector.multi_reduction <add>, %30, %cst_8 [0] : vector<1x8x51xf32> to vector<8x51xf32>
    %32 = arith.addf %25, %31 : vector<8x51xf32>
    %c0_9 = arith.constant 0 : index
    %c0_10 = arith.constant 0 : index
    %33 = vector.load %arg5[%c0_9, %c0_10] : memref<8x51xf32, #tpu.memory_space<vmem>>, vector<8x51xf32>
    %34 = arith.addf %33, %32 : vector<8x51xf32>
    %c0_11 = arith.constant 0 : index
    %c0_12 = arith.constant 0 : index
    %35 = vector.load %arg5[%c0_11, %c0_12] : memref<8x51xf32, #tpu.memory_space<vmem>>, vector<8x51xf32>
    tpu.vector_store %arg5[%c0_11, %c0_12], %34 {strides = array<i32>} : memref<8x51xf32, #tpu.memory_space<vmem>>, vector<8x51xf32>,
    %c0_i32_13 = arith.constant 0 : i32
    %36 = arith.cmpi eq, %arg1, %c0_i32_13 : i32
    %37 = arith.extui %36 : i1 to i32
    %c0_i32_14 = arith.constant 0 : i32
    %38 = arith.cmpi ne, %37, %c0_i32_14 : i32
    scf.if %38 {
      %c0_15 = arith.constant 0 : index
      %c0_16 = arith.constant 0 : index
      %39 = vector.load %arg5[%c0_15, %c0_16] : memref<8x51xf32, #tpu.memory_space<vmem>>, vector<8x51xf32>
      %40 = vector.shape_cast %39 : vector<8x51xf32> to vector<1x8x51xf32>
      %cst_17 = arith.constant dense<0.000000e+00> : vector<1xf32>
      %41 = vector.multi_reduction <add>, %40, %cst_17 [1, 2] : vector<1x8x51xf32> to vector<1xf32>
      %42 = vector.shape_cast %41 : vector<1xf32> to vector<1x1x1xf32>
      %43 = vector.extract %42[0, 0, 0] : f32 from vector<1x1x1xf32>
      %cst_18 = arith.constant 6.250000e-02 : f32
      %44 = arith.mulf %43, %cst_18 : f32
      %45 = vector.broadcast %44 : f32 to vector<1x8x128xf32>
      %c0_19 = arith.constant 0 : index
      %c0_20 = arith.constant 0 : index
      %c0_21 = arith.constant 0 : index
      %46 = vector.load %arg4[%c0_19, %c0_20, %c0_21] : memref<1x8x128xf32, #tpu.memory_space<vmem>>, vector<1x8x128xf32>
      tpu.vector_store %arg4[%c0_19, %c0_20, %c0_21], %45 {strides = array<i32>} : memref<1x8x128xf32, #tpu.memory_space<vmem>>, vector<1x8x128xf32>,
    } else {
    }
    return
  }
  func.func @transform_0(%arg0: i32, %arg1: i32) -> (i32, i32) {
    %c0_i32 = arith.constant 0 : i32
    %c0_i32_0 = arith.constant 0 : i32
    return %arg1, %c0_i32 : i32, i32
  }
  func.func @transform_1(%arg0: i32, %arg1: i32) -> (i32, i32) {
    %c0_i32 = arith.constant 0 : i32
    %c0_i32_0 = arith.constant 0 : i32
    return %arg1, %c0_i32 : i32, i32
  }
  func.func @transform_2(%arg0: i32, %arg1: i32) -> (i32, i32, i32) {
    %c0_i32 = arith.constant 0 : i32
    %c0_i32_0 = arith.constant 0 : i32
    %c0_i32_1 = arith.constant 0 : i32
    return %arg0, %c0_i32, %c0_i32_0 : i32, i32, i32
  }
}

</mosaic_0001>

<llo_original>
// kernel: tpu_custom_call.1
$region0: #{tpu_custom_call.1}
  #allocation0 [shape = 'u32[]', space=smem, size = 0x4, offset = 0x4, fixed_abs, tag = 'smem constant byte address 0x4 - core index']
  #allocation1 [shape = 'u32[144,128]{1,0:T(1,128)}', space=vmem, size = 0x12000, scoped, tag = 'internal scratch']
  #allocation2 [shape = 'f32[8,51]{1,0:T(8,128)}', space=vmem, size = 0x1000, scoped, tag = 'scratch operand']
  %s0 = inlined_call_operand.hbm [shape: f32[8,51], index: 0, kind: input, shape index: {}]
  %s1 = inlined_call_operand.hbm [shape: f32[8,51], index: 1, kind: input, shape index: {}]
  %s2 = inlined_call_operand.hbm [shape: f32[1,8,128], index: 2, kind: output, shape index: {}]
  %s3 = sld [smem:[#allocation0]]
  $region34: #{tpu_custom_call.1} parent=0
    _
  %s5 = ssub.s32 1, %s3
  %s6 = scalar_select 0, %s5, %s3
  $region1: #{tpu_custom_call.1} parent=0
    #allocation3 [shape = 'u8[4096]{0}', space=vmem, size = 0x1000, scoped, tag = 'input window, operand 0, single buffered']
    #allocation4 [shape = 's32[1]{0}', space=sflag, size = 0x4, scoped, tag = 'scoped memory for tpu_custom_call.1']
    #allocation5 [shape = 's32[1]{0}', space=sflag, size = 0x4, scoped, tag = 'scoped memory for tpu_custom_call.1']
    #allocation6 [shape = 'u8[4096]{0}', space=vmem, size = 0x1000, scoped, tag = 'input window, operand 1, single buffered']
    #allocation7 [shape = 's32[1]{0}', space=sflag, size = 0x4, scoped, tag = 'scoped memory for tpu_custom_call.1']
    #allocation8 [shape = 'u8[4096]{0}', space=vmem, size = 0x1000, scoped, tag = 'output window, operand 0, single buffered']
    %7 = vsyncpa [#allocation4], 0
    %8 = vsyncpa [#allocation7], 0
    %9 = vsyncpa [#allocation5], 0
    // Predicated region
    $region2: #{tpu_custom_call.1} parent=1 // pred_check
      _
    $region3: #{tpu_custom_call.1} parent=1 // pred_check_branch
      %11 = sbr.rel (0) target = $region5
    $region4: #{tpu_custom_call.1} parent=1 // pred_region
      %s13 = ssub.s32 128, 128
      %14 = vsyncadd [#allocation4], %s13
      %s16 = sshll.u32 [#allocation3], 4
      %s17 = int_to_ptr.vmem [resolvable:$true] %s16
      %19 = dma.hbm_to_vmem [thread:$0]  %s0, 128, %s17, [#allocation4]
    $region5: #{tpu_custom_call.1} parent=1 // pred_fallthru
      _
    // Predicated region
    $region6: #{tpu_custom_call.1} parent=1 // pred_check
      _
    $region7: #{tpu_custom_call.1} parent=1 // pred_check_branch
      %21 = sbr.rel (0) target = $region9
    $region8: #{tpu_custom_call.1} parent=1 // pred_region
      %s23 = ssub.s32 128, 128
      %24 = vsyncadd [#allocation7], %s23
      %s26 = sshll.u32 [#allocation6], 4
      %s27 = int_to_ptr.vmem [resolvable:$true] %s26
      %29 = dma.hbm_to_vmem [thread:$0]  %s1, 128, %s27, [#allocation7]
    $region9: #{tpu_custom_call.1} parent=1 // pred_fallthru
      _
    // Predicated region
    $region10: #{tpu_custom_call.1} parent=1 // pred_check
      _
    $region11: #{tpu_custom_call.1} parent=1 // pred_check_branch
      %31 = sbr.rel (0) target = $region13
    $region12: #{tpu_custom_call.1} parent=1 // pred_region
      %32 = dma.done [#allocation4], 128
    $region13: #{tpu_custom_call.1} parent=1 // pred_fallthru
      _
    // Predicated region
    $region14: #{tpu_custom_call.1} parent=1 // pred_check
      _
    $region15: #{tpu_custom_call.1} parent=1 // pred_check_branch
      %34 = sbr.rel (0) target = $region17
    $region16: #{tpu_custom_call.1} parent=1 // pred_region
      %35 = dma.done [#allocation7], 128
    $region17: #{tpu_custom_call.1} parent=1 // pred_fallthru
      _
    %p36 = scmp.eq.s32.totalorder 0, 0
    // Predicated region
    $region18: #{tpu_custom_call.1} parent=1 // pred_check
      %p37 = pneg %p36
    $region19: #{tpu_custom_call.1} parent=1 // pred_check_branch
      %39 = sbr.rel (%p37) target = $region21
    $region20: #{tpu_custom_call.1} parent=1 // pred_region
      %vm40 = vcmask 416768
      %41 = vst.msk [vmem:[#allocation2] sm:$0xff] %vm40, 0.0
    $region21: #{tpu_custom_call.1} parent=1 // pred_fallthru
      _
    %s42 = sadd.s32 0, 0
    %s43 = smul.u32 %s42, 8
    %v44 = vlaneseq
    %v45 = vshrl.u32 %v44, 7
    %v46 = vstv %s43
    %v47 = vadd.s32 %v46, %v45
    %v48 = vlaneseq
    %v49 = vand.u32 %v48, 127
    %vm50 = vcmp.lt.s32.totalorder %v47, 8
    %vm51 = vcmp.ge.s32.totalorder %v49, 3
    %vm52 = vmand %vm50, %vm51
    %vm53 = vcmp.lt.s32.totalorder %v49, 48
    %vm54 = vmand %vm52, %vm53
    %v55 = vld [vmem:[#allocation3] sm:$0xff]
    %v56 = vmul.f32 %v55, %v55
    %v57 = vsel %vm54, %v56, 0.0
    %v58 = vadd.f32 %v57, 0.0
    %v59 = vadd.f32 %v58, 0.0
    %v60 = vld [vmem:[#allocation6] sm:$0xff]
    %v61 = vmul.f32 %v60, %v60
    %v62 = vsel %vm54, %v61, 0.0
    %v63 = vadd.f32 %v62, 0.0
    %v64 = vadd.f32 %v59, %v63
    %v65 = vld [vmem:[#allocation2] sm:$0xff]
    %v66 = vadd.f32 %v65, %v64
    %vm67 = vcmask 416768
    %68 = vst.msk [vmem:[#allocation2] sm:$0xff] %vm67, %v66
    // Predicated region
    $region22: #{tpu_custom_call.1} parent=1 // pred_check
      %p69 = pneg %p36
    $region23: #{tpu_custom_call.1} parent=1 // pred_check_branch
      %71 = sbr.rel (%p69) target = $region25
    $region24: #{tpu_custom_call.1} parent=1 // pred_region
      %v72 = vld [vmem:[#allocation2] sm:$0xff]
      %v73 = vsel %vm67, %v72, 0.0
      %74 = vadd.xlane.f32.xlu0 %v73
      %v75 = vpop.xlane.xlu0 %74
      %v76 = vrot.slane %v75, 4
      %v77 = vadd.f32 %v75, %v76
      %v78 = vrot.slane %v77, 2
      %v79 = vadd.f32 %v77, %v78
      %v80 = vrot.slane %v79, 1
      %v81 = vadd.f32 %v79, %v80
      %s82 = vtos %v81
      %s83 = smul.f32 %s82, 0.0625
      %v84 = vstv %s83
      %85 = vst [vmem:[#allocation8] sm:$0xff] %v84
    $region25: #{tpu_custom_call.1} parent=1 // pred_fallthru
      _
    // Predicated region
    $region26: #{tpu_custom_call.1} parent=1 // pred_check
      _
    $region27: #{tpu_custom_call.1} parent=1 // pred_check_branch
      %87 = sbr.rel (0) target = $region29
    $region28: #{tpu_custom_call.1} parent=1 // pred_region
      %s89 = ssub.s32 128, 128
      %90 = vsyncadd [#allocation5], %s89
      %s92 = sshll.u32 [#allocation8], 4
      %s93 = int_to_ptr.vmem [resolvable:$true] %s92
      %95 = dma.vmem_to_hbm [thread:$0]  %s93, 128, %s2, [#allocation5]
    $region29: #{tpu_custom_call.1} parent=1 // pred_fallthru
      _
    // Predicated region
    $region30: #{tpu_custom_call.1} parent=1 // pred_check
      _
    $region31: #{tpu_custom_call.1} parent=1 // pred_check_branch
      %97 = sbr.rel (0) target = $region33
    $region32: #{tpu_custom_call.1} parent=1 // pred_region
      %98 = dma.done [#allocation5], 128
    $region33: #{tpu_custom_call.1} parent=1 // pred_fallthru
      _
    %99 = vsyncpa [#allocation4], 1
    %100 = vsyncpa [#allocation7], 1
    %101 = vsyncpa [#allocation5], 1

</llo_original>
